<compile_context>
chip_gen: v7x
topology: tpu7x:2x2x1
jax: 0.10.0
libtpu: 0.0.40
codegen_flags: <defaults>
</compile_context>

<pallas_src>
import functools

import jax
import jax.numpy as jnp
from jax.experimental import pallas as pl
from jax.experimental.pallas import tpu as pltpu


def _mlp_kernel(x_ref, wg_ref, wu_ref, wd_ref, o_ref, acc_ref):
    # x_ref  : (tm, H)   token tile (native dtype, e.g. bf16)
    # wg_ref : (H, ti)   gate-projection weight tile
    # wu_ref : (H, ti)   up-projection weight tile
    # wd_ref : (ti, H)   down-projection weight tile
    # o_ref  : (tm, H)   output tile
    # acc_ref: (tm, H)   f32 accumulator, resident across the I axis
    j = pl.program_id(1)

    @pl.when(j == 0)
    def _init():
        acc_ref[...] = jnp.zeros_like(acc_ref)

    x = x_ref[...]  # keep native dtype: MXU runs bf16 @ bf16 -> f32 at full rate
    gate = jnp.dot(x, wg_ref[...], preferred_element_type=jnp.float32)  # (tm, ti)
    up = jnp.dot(x, wu_ref[...], preferred_element_type=jnp.float32)    # (tm, ti)

    # SiluAndMul: silu(gate) * up, computed in f32 then cast back for the MXU.
    h = (gate * jax.lax.logistic(gate)) * up
    h = h.astype(wd_ref.dtype)

    acc_ref[...] += jnp.dot(h, wd_ref[...], preferred_element_type=jnp.float32)

    @pl.when(j == pl.num_programs(1) - 1)
    def _finalize():
        o_ref[...] = acc_ref[...].astype(o_ref.dtype)


def _pick_intermediate_tile(intermediate_size: int) -> int:
    for cand in (512, 1024, 256, 128):
        if intermediate_size % cand == 0:
            return cand
    return intermediate_size  # full dim (always legal as a block shape)


def deepseek_v2_mlp(
    x,
    w_gate_up,
    w_down,
    *,
    block_tokens=None,
    block_intermediate=None,
    vmem_limit_bytes=64 * 1024 * 1024,
):
    """DeepseekV2 MLP forward.

    x:         [T, H]
    w_gate_up: [H, 2*I]   (merged gate/up projection, pre-transposed)
    w_down:    [I, H]     (down projection, pre-transposed)
    returns    [T, H]
    """
    T, H = x.shape
    two_I = w_gate_up.shape[1]
    I = two_I // 2
    assert w_gate_up.shape == (H, 2 * I)
    assert w_down.shape == (I, H)

    # Token tile: bounded (don't scale VMEM with prefill length).
    tm = block_tokens if block_tokens is not None else min(T, 256)
    # Intermediate tile: stream weights in bounded chunks.
    ti = block_intermediate if block_intermediate is not None else _pick_intermediate_tile(I)
    assert I % ti == 0, "block_intermediate must divide the intermediate size"

    # Pad ragged token counts up to a multiple of the token tile (zeros are
    # harmless: silu(0)*0 = 0 contributes nothing and padded rows are dropped).
    T_pad = ((T + tm - 1) // tm) * tm
    x_in = x if T_pad == T else jnp.pad(x, ((0, T_pad - T), (0, 0)))

    # Split the merged gate/up weight once on the host side so the kernel never
    # materializes a (tm, 2*I) intermediate and each half streams as (H, ti).
    # TODO(synk): in a real serving stack pre-split the merged weight at load
    # time instead of slicing per call.
    w_gate = w_gate_up[:, :I]
    w_up = w_gate_up[:, I:]

    grid = (T_pad // tm, I // ti)

    out = pl.pallas_call(
        _mlp_kernel,
        out_shape=jax.ShapeDtypeStruct((T_pad, H), x.dtype),
        grid_spec=pltpu.PrefetchScalarGridSpec(
            num_scalar_prefetch=0,
            grid=grid,
            in_specs=[
                pl.BlockSpec((tm, H), lambda i, j: (i, 0)),   # x token tile
                pl.BlockSpec((H, ti), lambda i, j: (0, j)),   # gate weight tile
                pl.BlockSpec((H, ti), lambda i, j: (0, j)),   # up weight tile
                pl.BlockSpec((ti, H), lambda i, j: (j, 0)),   # down weight tile
            ],
            out_specs=pl.BlockSpec((tm, H), lambda i, j: (i, 0)),
            scratch_shapes=[pltpu.VMEM((tm, H), jnp.float32)],  # f32 accumulator
        ),
        compiler_params=pltpu.CompilerParams(
            dimension_semantics=("parallel", "arbitrary"),
            vmem_limit_bytes=vmem_limit_bytes,
        ),
    )(x_in, w_gate, w_up, w_down)

    return out if T_pad == T else out[:T]


def _reference(x, w_gate_up, w_down):
    I = w_gate_up.shape[1] // 2
    xf = x.astype(jnp.float32)
    gu = xf @ w_gate_up.astype(jnp.float32)
    gate, up = gu[:, :I], gu[:, I:]
    h = jax.nn.silu(gate) * up
    return (h @ w_down.astype(jnp.float32)).astype(x.dtype)


if __name__ == "__main__":
    # Small shapes consistent with the module: tokens=16, hidden=256, intermediate=512.
    T, H, I = 16, 256, 512

    key = jax.random.PRNGKey(0)
    k_x, k_gu, k_d = jax.random.split(key, 3)

    # ---- f32 check (tight tolerance) ----
    x_f32 = jax.random.normal(k_x, (T, H), dtype=jnp.float32)
    w_gu_f32 = jax.random.normal(k_gu, (H, 2 * I), dtype=jnp.float32) * 0.02
    w_d_f32 = jax.random.normal(k_d, (I, H), dtype=jnp.float32) * 0.02

    out_f32 = deepseek_v2_mlp(
        x_f32, w_gu_f32, w_d_f32, block_tokens=8, block_intermediate=256
    )
    out_f32 = jax.block_until_ready(out_f32)
    ref_f32 = _reference(x_f32, w_gu_f32, w_d_f32)
    assert out_f32.shape == (T, H)
    assert jnp.allclose(out_f32, ref_f32, atol=1e-4, rtol=1e-4), "f32 mismatch"

    # ---- bf16 fast path (native-dtype MXU operands, f32 accumulation) ----
    x_bf16 = x_f32.astype(jnp.bfloat16)
    w_gu_bf16 = w_gu_f32.astype(jnp.bfloat16)
    w_d_bf16 = w_d_f32.astype(jnp.bfloat16)

    out_bf16 = deepseek_v2_mlp(x_bf16, w_gu_bf16, w_d_bf16)  # default tiling
    out_bf16 = jax.block_until_ready(out_bf16)
    ref_bf16 = _reference(x_bf16, w_gu_bf16, w_d_bf16)
    assert out_bf16.shape == (T, H)
    assert jnp.allclose(
        out_bf16.astype(jnp.float32),
        ref_bf16.astype(jnp.float32),
        atol=2e-2,
        rtol=5e-2,
    ), "bf16 mismatch"

    print("KERNEL_OK")
</pallas_src>

<mosaic_0001>
module attributes {stable_mosaic.version = 11 : i64} {
  func.func @_mlp_kernel(%arg0: i32, %arg1: i32, %arg2: memref<8x256xf32, #tpu.memory_space<vmem>>, %arg3: memref<256x256xf32, #tpu.memory_space<vmem>>, %arg4: memref<256x256xf32, #tpu.memory_space<vmem>>, %arg5: memref<256x256xf32, #tpu.memory_space<vmem>>, %arg6: memref<8x256xf32, #tpu.memory_space<vmem>>, %arg7: memref<8x256xf32, #tpu.memory_space<vmem>>) attributes {dimension_semantics = [#tpu.dimension_semantics<parallel>, #tpu.dimension_semantics<arbitrary>], iteration_bounds = array<i64: 2, 2>, scalar_prefetch = 0 : i64, scratch_operands = 1 : i64, tpu.core_type = #tpu.core_type<tc>, window_params = [{transform_indices = @transform_0, window_bounds = array<i64: 8, 256>}, {transform_indices = @transform_1, window_bounds = array<i64: 256, 256>}, {transform_indices = @transform_2, window_bounds = array<i64: 256, 256>}, {transform_indices = @transform_3, window_bounds = array<i64: 256, 256>}, {transform_indices = @transform_4, window_bounds = array<i64: 8, 256>}]} {
    %c0_i32 = arith.constant 0 : i32
    %0 = arith.cmpi eq, %arg1, %c0_i32 : i32
    %1 = arith.extui %0 : i1 to i32
    %c0_i32_0 = arith.constant 0 : i32
    %2 = arith.cmpi ne, %1, %c0_i32_0 : i32
    scf.if %2 {
      %cst_16 = arith.constant 0.000000e+00 : f32
      %23 = vector.broadcast %cst_16 : f32 to vector<8x256xf32>
      %c0_17 = arith.constant 0 : index
      %c0_18 = arith.constant 0 : index
      %24 = vector.load %arg7[%c0_17, %c0_18] : memref<8x256xf32, #tpu.memory_space<vmem>>, vector<8x256xf32>
      tpu.vector_store %arg7[%c0_17, %c0_18], %23 {strides = array<i32>} : memref<8x256xf32, #tpu.memory_space<vmem>>, vector<8x256xf32>,
    } else {
    }
    %c0 = arith.constant 0 : index
    %c0_1 = arith.constant 0 : index
    %3 = vector.load %arg2[%c0, %c0_1] : memref<8x256xf32, #tpu.memory_space<vmem>>, vector<8x256xf32>
    %c0_2 = arith.constant 0 : index
    %c0_3 = arith.constant 0 : index
    %4 = vector.load %arg3[%c0_2, %c0_3] : memref<256x256xf32, #tpu.memory_space<vmem>>, vector<256x256xf32>
    %cst = arith.constant dense<0.000000e+00> : vector<8x256xf32>
    %5 = tpu.matmul %3, %4, %cst {dimension_numbers = #tpu.dot_dimension_numbers<[1], [0], [0], [1], [0, 0, 1, 1], [], []>} : vector<8x256xf32>, vector<256x256xf32>, vector<8x256xf32> -> vector<8x256xf32>
    %c0_4 = arith.constant 0 : index
    %c0_5 = arith.constant 0 : index
    %6 = vector.load %arg4[%c0_4, %c0_5] : memref<256x256xf32, #tpu.memory_space<vmem>>, vector<256x256xf32>
    %cst_6 = arith.constant dense<0.000000e+00> : vector<8x256xf32>
    %7 = tpu.matmul %3, %6, %cst_6 {dimension_numbers = #tpu.dot_dimension_numbers<[1], [0], [0], [1], [0, 0, 1, 1], [], []>} : vector<8x256xf32>, vector<256x256xf32>, vector<8x256xf32> -> vector<8x256xf32>
    %8 = arith.negf %5 : vector<8x256xf32>
    %9 = math.exp %8 : vector<8x256xf32>
    %cst_7 = arith.constant 1.000000e+00 : f32
    %10 = vector.broadcast %cst_7 : f32 to vector<8x256xf32>
    %11 = arith.addf %10, %9 : vector<8x256xf32>
    %12 = arith.divf %10, %11 : vector<8x256xf32>
    %13 = arith.mulf %5, %12 : vector<8x256xf32>
    %14 = arith.mulf %13, %7 : vector<8x256xf32>
    %c0_8 = arith.constant 0 : index
    %c0_9 = arith.constant 0 : index
    %15 = vector.load %arg7[%c0_8, %c0_9] : memref<8x256xf32, #tpu.memory_space<vmem>>, vector<8x256xf32>
    %c0_10 = arith.constant 0 : index
    %c0_11 = arith.constant 0 : index
    %16 = vector.load %arg5[%c0_10, %c0_11] : memref<256x256xf32, #tpu.memory_space<vmem>>, vector<256x256xf32>
    %cst_12 = arith.constant dense<0.000000e+00> : vector<8x256xf32>
    %17 = tpu.matmul %14, %16, %cst_12 {dimension_numbers = #tpu.dot_dimension_numbers<[1], [0], [0], [1], [0, 0, 1, 1], [], []>} : vector<8x256xf32>, vector<256x256xf32>, vector<8x256xf32> -> vector<8x256xf32>
    %18 = arith.addf %15, %17 : vector<8x256xf32>
    %c0_13 = arith.constant 0 : index
    %c0_14 = arith.constant 0 : index
    %19 = vector.load %arg7[%c0_13, %c0_14] : memref<8x256xf32, #tpu.memory_space<vmem>>, vector<8x256xf32>
    tpu.vector_store %arg7[%c0_13, %c0_14], %18 {strides = array<i32>} : memref<8x256xf32, #tpu.memory_space<vmem>>, vector<8x256xf32>,
    %c1_i32 = arith.constant 1 : i32
    %20 = arith.cmpi eq, %arg1, %c1_i32 : i32
    %21 = arith.extui %20 : i1 to i32
    %c0_i32_15 = arith.constant 0 : i32
    %22 = arith.cmpi ne, %21, %c0_i32_15 : i32
    scf.if %22 {
      %c0_16 = arith.constant 0 : index
      %c0_17 = arith.constant 0 : index
      %23 = vector.load %arg7[%c0_16, %c0_17] : memref<8x256xf32, #tpu.memory_space<vmem>>, vector<8x256xf32>
      %c0_18 = arith.constant 0 : index
      %c0_19 = arith.constant 0 : index
      %24 = vector.load %arg6[%c0_18, %c0_19] : memref<8x256xf32, #tpu.memory_space<vmem>>, vector<8x256xf32>
      tpu.vector_store %arg6[%c0_18, %c0_19], %23 {strides = array<i32>} : memref<8x256xf32, #tpu.memory_space<vmem>>, vector<8x256xf32>,
    } else {
    }
    return
  }
  func.func @transform_0(%arg0: i32, %arg1: i32) -> (i32, i32) {
    %c0_i32 = arith.constant 0 : i32
    %c0_i32_0 = arith.constant 0 : i32
    return %arg0, %c0_i32 : i32, i32
  }
  func.func @transform_1(%arg0: i32, %arg1: i32) -> (i32, i32) {
    %c0_i32 = arith.constant 0 : i32
    %c0_i32_0 = arith.constant 0 : i32
    return %c0_i32, %arg1 : i32, i32
  }
  func.func @transform_2(%arg0: i32, %arg1: i32) -> (i32, i32) {
    %c0_i32 = arith.constant 0 : i32
    %c0_i32_0 = arith.constant 0 : i32
    return %c0_i32, %arg1 : i32, i32
  }
  func.func @transform_3(%arg0: i32, %arg1: i32) -> (i32, i32) {
    %c0_i32 = arith.constant 0 : i32
    %c0_i32_0 = arith.constant 0 : i32
    return %arg1, %c0_i32 : i32, i32
  }
  func.func @transform_4(%arg0: i32, %arg1: i32) -> (i32, i32) {
    %c0_i32 = arith.constant 0 : i32
    %c0_i32_0 = arith.constant 0 : i32
    return %arg0, %c0_i32 : i32, i32
  }
}

</mosaic_0001>

<llo_original>
// kernel: tpu_custom_call.1
$region0: #{tpu_custom_call.1}
  #allocation0 [shape = 'u32[]', space=smem, size = 0x4, offset = 0x4, fixed_abs, tag = 'smem constant byte address 0x4 - core index']
  #allocation1 [shape = 'u32[144,128]{1,0:T(1,128)}', space=vmem, size = 0x12000, scoped, tag = 'internal scratch']
  #allocation2 [shape = 'f32[8,256]{1,0:T(8,128)}', space=vmem, size = 0x2000, scoped, tag = 'scratch operand']
  %s0 = inlined_call_operand.hbm [shape: f32[16,256], index: 0, kind: input, shape index: {}]
  %s1 = inlined_call_operand.hbm [shape: f32[256,512], index: 1, kind: input, shape index: {}]
  %s2 = inlined_call_operand.hbm [shape: f32[256,512], index: 2, kind: input, shape index: {}]
  %s3 = inlined_call_operand.hbm [shape: f32[512,256], index: 3, kind: input, shape index: {}]
  %s4 = inlined_call_operand.hbm [shape: f32[16,256], index: 4, kind: output, shape index: {}]
  %s5 = sld [smem:[#allocation0]]
  $region73: #{tpu_custom_call.1} parent=0
    _
  %s7 = ssub.s32 1, %s5
  %s8 = scalar_select 0, %s7, %s5
  $region1: #{tpu_custom_call.1} parent=0
    #allocation3 [shape = 'u8[16384]{0}', space=vmem, size = 0x4000, scoped, tag = 'input window, operand 0']
    #allocation4 [shape = 's32[2]{0}', space=sflag, size = 0x8, scoped, tag = 'scoped memory for tpu_custom_call.1']
    #allocation5 [shape = 's32[2]{0}', space=sflag, size = 0x8, scoped, tag = 'scoped memory for tpu_custom_call.1']
    #allocation6 [shape = 'u8[524288]{0}', space=vmem, size = 0x80000, scoped, tag = 'input window, operand 1']
    #allocation7 [shape = 's32[2]{0}', space=sflag, size = 0x8, scoped, tag = 'scoped memory for tpu_custom_call.1']
    #allocation8 [shape = 'u8[524288]{0}', space=vmem, size = 0x80000, scoped, tag = 'input window, operand 2']
    #allocation9 [shape = 'u8[524288]{0}', space=vmem, size = 0x80000, scoped, tag = 'input window, operand 3']
    #allocation10 [shape = 's32[2]{0}', space=sflag, size = 0x8, scoped, tag = 'scoped memory for tpu_custom_call.1']
    #allocation11 [shape = 'u8[16384]{0}', space=vmem, size = 0x4000, scoped, tag = 'output window, operand 0']
    %9 = vsyncpa [#allocation4], 0
    %s10 = scalar_lea.sflag [#allocation4], 1
    %11 = vsyncpa %s10, 0
    %12 = vsyncpa [#allocation7], 0
    %s13 = scalar_lea.sflag [#allocation7], 1
    %14 = vsyncpa %s13, 0
    %15 = vsyncpa [#allocation10], 0
    %s16 = scalar_lea.sflag [#allocation10], 1
    %17 = vsyncpa %s16, 0
    %18 = vsyncpa [#allocation5], 0
    %s19 = scalar_lea.sflag [#allocation5], 1
    %20 = vsyncpa %s19, 0
    loop: start=0, step=1, limit=6
    $region2: #{tpu_custom_call.1} parent=1 // loop_pre_header
      _
    $region3: #{tpu_custom_call.1} parent=1 // loop_header
      %s22 = sphi 0, %s26
      %p23 = scmp.ge.s32.totalorder %s22, 6
      %s29 = sphi 0, %s41
      %s30 = sphi 0, %s37
      %s31 = sphi 0, %s29
      %s32 = sphi 0, %s30
      %s33 = sphi 0, %s31
      %s34 = sphi 0, %s32
      %s44 = sphi 0, %s46
      %s47 = sphi 0, %s44
      %s48 = sphi 0, %s47
      %s64 = sphi 0, %s48
      %s70 = sphi 0, %s72
      %s73 = sphi 0, %s70
      %s74 = sphi 0, %s73
      %s90 = sphi 0, %s74
      %s96 = sphi 0, %s98
      %s99 = sphi 0, %s96
      %s100 = sphi 0, %s99
      %s116 = sphi 0, %s100
      %s122 = sphi 0, %s124
      %s125 = sphi 0, %s122
      %s126 = sphi 0, %s125
      %s142 = sphi 0, %s126
      %s148 = sphi 0, %s150
      %s151 = sphi 0, %s148
      %s152 = sphi 0, %s151
      %s168 = sphi 0, %s152
    $region4: #{tpu_custom_call.1} parent=1 // loop_header_branch
      %25 = sbr.rel (%p23) target = $region8
    $region5: #{tpu_custom_call.1} parent=1 // loop_body
      %s27 = ssub.s32 %s22, 1
      %s28 = ssub.s32 %s22, 2
      %s35 = sadd.s32 1, %s30
      %p36 = scmp.ge.s32.totalorder %s35, 2
      %s37 = scalar_select %p36, 0, %s35
      %s38 = sadd.s32 1, %s29
      %s39 = scalar_select %p36, %s38, %s29
      %p40 = scmp.ge.s32.totalorder %s39, 2
      %s41 = scalar_select %p40, 0, %s39
      %s42 = ssub.s32 %s29, %s41
      %p43 = scmp.eq.s32.totalorder %s42, 0
      %s45 = sadd.s32 %s44, 1
      %s46 = scalar_select %p43, %s44, %s45
      %p49 = pneg %p43
      %p50 = scmp.eq.s32.totalorder %s22, 3
      %p51 = por %p49, %p50
      %p52 = scmp.ne.s32.totalorder %s44, %s47
      %p53 = scmp.eq.s32.totalorder %s22, 0
      %p54 = por %p52, %p53
      %p55 = scmp.ne.s32.totalorder %s44, %s47
      %p56 = scmp.eq.s32.totalorder %s27, 3
      %p57 = por %p55, %p56
      %p58 = scmp.ne.s32.totalorder %s47, %s48
      %p59 = scmp.eq.s32.totalorder %s27, 0
      %p60 = por %p58, %p59
      %p61 = scmp.ne.s32.totalorder %s47, %s48
      %p62 = scmp.eq.s32.totalorder %s28, 3
      %p63 = por %p61, %p62
      %p65 = scmp.ne.s32.totalorder %s48, %s64
      %p66 = scmp.eq.s32.totalorder %s28, 0
      %p67 = por %p65, %p66
      %s68 = ssub.s32 %s30, %s37
      %p69 = scmp.eq.s32.totalorder %s68, 0
      %s71 = sadd.s32 %s70, 1
      %s72 = scalar_select %p69, %s70, %s71
      %p75 = pneg %p69
      %p76 = scmp.eq.s32.totalorder %s22, 3
      %p77 = por %p75, %p76
      %p78 = scmp.ne.s32.totalorder %s70, %s73
      %p79 = scmp.eq.s32.totalorder %s22, 0
      %p80 = por %p78, %p79
      %p81 = scmp.ne.s32.totalorder %s70, %s73
      %p82 = scmp.eq.s32.totalorder %s27, 3
      %p83 = por %p81, %p82
      %p84 = scmp.ne.s32.totalorder %s73, %s74
      %p85 = scmp.eq.s32.totalorder %s27, 0
      %p86 = por %p84, %p85
      %p87 = scmp.ne.s32.totalorder %s73, %s74
      %p88 = scmp.eq.s32.totalorder %s28, 3
      %p89 = por %p87, %p88
      %p91 = scmp.ne.s32.totalorder %s74, %s90
      %p92 = scmp.eq.s32.totalorder %s28, 0
      %p93 = por %p91, %p92
      %s94 = ssub.s32 %s30, %s37
      %p95 = scmp.eq.s32.totalorder %s94, 0
      %s97 = sadd.s32 %s96, 1
      %s98 = scalar_select %p95, %s96, %s97
      %p101 = pneg %p95
      %p102 = scmp.eq.s32.totalorder %s22, 3
      %p103 = por %p101, %p102
      %p104 = scmp.ne.s32.totalorder %s96, %s99
      %p105 = scmp.eq.s32.totalorder %s22, 0
      %p106 = por %p104, %p105
      %p107 = scmp.ne.s32.totalorder %s96, %s99
      %p108 = scmp.eq.s32.totalorder %s27, 3
      %p109 = por %p107, %p108
      %p110 = scmp.ne.s32.totalorder %s99, %s100
      %p111 = scmp.eq.s32.totalorder %s27, 0
      %p112 = por %p110, %p111
      %p113 = scmp.ne.s32.totalorder %s99, %s100
      %p114 = scmp.eq.s32.totalorder %s28, 3
      %p115 = por %p113, %p114
      %p117 = scmp.ne.s32.totalorder %s100, %s116
      %p118 = scmp.eq.s32.totalorder %s28, 0
      %p119 = por %p117, %p118
      %s120 = ssub.s32 %s30, %s37
      %p121 = scmp.eq.s32.totalorder %s120, 0
      %s123 = sadd.s32 %s122, 1
      %s124 = scalar_select %p121, %s122, %s123
      %p127 = pneg %p121
      %p128 = scmp.eq.s32.totalorder %s22, 3
      %p129 = por %p127, %p128
      %p130 = scmp.ne.s32.totalorder %s122, %s125
      %p131 = scmp.eq.s32.totalorder %s22, 0
      %p132 = por %p130, %p131
      %p133 = scmp.ne.s32.totalorder %s122, %s125
      %p134 = scmp.eq.s32.totalorder %s27, 3
      %p135 = por %p133, %p134
      %p136 = scmp.ne.s32.totalorder %s125, %s126
      %p137 = scmp.eq.s32.totalorder %s27, 0
      %p138 = por %p136, %p137
      %p139 = scmp.ne.s32.totalorder %s125, %s126
      %p140 = scmp.eq.s32.totalorder %s28, 3
      %p141 = por %p139, %p140
      %p143 = scmp.ne.s32.totalorder %s126, %s142
      %p144 = scmp.eq.s32.totalorder %s28, 0
      %p145 = por %p143, %p144
      %s146 = ssub.s32 %s29, %s41
      %p147 = scmp.eq.s32.totalorder %s146, 0
      %s149 = sadd.s32 %s148, 1
      %s150 = scalar_select %p147, %s148, %s149
      %p153 = pneg %p147
      %p154 = scmp.eq.s32.totalorder %s22, 3
      %p155 = por %p153, %p154
      %p156 = scmp.ne.s32.totalorder %s148, %s151
      %p157 = scmp.eq.s32.totalorder %s22, 0
      %p158 = por %p156, %p157
      %p159 = scmp.ne.s32.totalorder %s148, %s151
      %p160 = scmp.eq.s32.totalorder %s27, 3
      %p161 = por %p159, %p160
      %p162 = scmp.ne.s32.totalorder %s151, %s152
      %p163 = scmp.eq.s32.totalorder %s27, 0
      %p164 = por %p162, %p163
      %p165 = scmp.ne.s32.totalorder %s151, %s152
      %p166 = scmp.eq.s32.totalorder %s28, 3
      %p167 = por %p165, %p166
      %p169 = scmp.ne.s32.totalorder %s152, %s168
      %p170 = scmp.eq.s32.totalorder %s28, 0
      %p171 = por %p169, %p170
      %p172 = scmp.le.s32.totalorder 1, %s22
      %p173 = scmp.lt.s32.totalorder %s22, 5
      %p174 = pnand %p172, %p173
      %p175 = pneg %p174
      // Predicated region
      $region9: #{tpu_custom_call.1} parent=5 // pred_check
        _
      $region10: #{tpu_custom_call.1} parent=5 // pred_check_branch
        %177 = sbr.rel (%p174) target = $region12
      $region11: #{tpu_custom_call.1} parent=5 // pred_region
        %s178 = ssub.s32 %s22, 1
      $region12: #{tpu_custom_call.1} parent=5 // pred_fallthru
        _
      %p179 = scmp.lt.s32.totalorder %s22, 4
      // Predicated region
      $region13: #{tpu_custom_call.1} parent=5 // pred_check
        %p180 = pneg %p179
      $region14: #{tpu_custom_call.1} parent=5 // pred_check_branch
        %182 = sbr.rel (%p180) target = $region16
      $region15: #{tpu_custom_call.1} parent=5 // pred_region
        // Predicated region
        $region17: #{tpu_custom_call.1} parent=15 // pred_check
          %p183 = pneg %p54
        $region18: #{tpu_custom_call.1} parent=15 // pred_check_branch
          %185 = sbr.rel (%p183) target = $region20
        $region19: #{tpu_custom_call.1} parent=15 // pred_region
          %s186 = sand.u32 %s44, 1
          %s187 = scalar_lea.sflag [#allocation4], %s186
          %s188 = sand.u32 %s44, 1
          %s189 = smul.addr %s188, 16
          %s190 = scalar_lea.vmem [#allocation3], %s189
          %s192 = ssub.s32 256, 256
          %193 = vsyncadd %s187, %s192
          %s194 = smul.addr %s29, 2
          %s195 = smul.addr %s194, 128
          %s196 = scalar_lea.hbm %s0, %s195
          %s198 = sshll.u32 %s190, 4
          %s199 = int_to_ptr.vmem [resolvable:$true] %s198
          %201 = dma.hbm_to_vmem [thread:$0]  %s196, 256, %s199, %s187
        $region20: #{tpu_custom_call.1} parent=15 // pred_fallthru
          _
        // Predicated region
        $region21: #{tpu_custom_call.1} parent=15 // pred_check
          %p202 = pneg %p80
        $region22: #{tpu_custom_call.1} parent=15 // pred_check_branch
          %204 = sbr.rel (%p202) target = $region24
        $region23: #{tpu_custom_call.1} parent=15 // pred_region
          %s205 = sand.u32 %s22, 1
          %s206 = scalar_lea.sflag [#allocation7], %s205
          %s207 = sand.u32 %s70, 1
          %s208 = smul.addr %s207, 512
          %s209 = scalar_lea.vmem [#allocation6], %s208
          %s210 = smul.u32 2, %s30
          %s212 = ssub.s32 8192, 8192
          %213 = vsyncadd %s206, %s212
          %s214 = smul.addr %s210, 128
          %s215 = scalar_lea.hbm %s1, %s214
          %s216 = sshll.u32 %s209, 4
          %s217 = int_to_ptr.vmem [resolvable:$true] %s216
          %222 = dma.hbm_to_vmem [thread:$0]  %s215, 8192, %s217, %s206, 512, 256, 16
        $region24: #{tpu_custom_call.1} parent=15 // pred_fallthru
          _
        // Predicated region
        $region25: #{tpu_custom_call.1} parent=15 // pred_check
          %p223 = pneg %p106
        $region26: #{tpu_custom_call.1} parent=15 // pred_check_branch
          %225 = sbr.rel (%p223) target = $region28
        $region27: #{tpu_custom_call.1} parent=15 // pred_region
          %s226 = sand.u32 %s22, 1
          %s227 = scalar_lea.sflag [#allocation7], %s226
          %s228 = sand.u32 %s96, 1
          %s229 = smul.addr %s228, 512
          %s230 = scalar_lea.vmem [#allocation8], %s229
          %s231 = smul.u32 2, %s30
          %s233 = ssub.s32 8192, 8192
          %234 = vsyncadd %s227, %s233
          %s235 = smul.addr %s231, 128
          %s236 = scalar_lea.hbm %s2, %s235
          %s237 = sshll.u32 %s230, 4
          %s238 = int_to_ptr.vmem [resolvable:$true] %s237
          %243 = dma.hbm_to_vmem [thread:$0]  %s236, 8192, %s238, %s227, 512, 256, 16
        $region28: #{tpu_custom_call.1} parent=15 // pred_fallthru
          _
        // Predicated region
        $region29: #{tpu_custom_call.1} parent=15 // pred_check
          %p244 = pneg %p132
        $region30: #{tpu_custom_call.1} parent=15 // pred_check_branch
          %246 = sbr.rel (%p244) target = $region32
        $region31: #{tpu_custom_call.1} parent=15 // pred_region
          %s247 = sand.u32 %s122, 1
          %s248 = scalar_lea.sflag [#allocation10], %s247
          %s249 = sand.u32 %s122, 1
          %s250 = smul.addr %s249, 512
          %s251 = scalar_lea.vmem [#allocation9], %s250
          %s252 = smul.u32 32, %s30
          %s254 = ssub.s32 8192, 8192
          %255 = vsyncadd %s248, %s254
          %s256 = smul.addr %s252, 2
          %s257 = smul.addr %s256, 128
          %s258 = scalar_lea.hbm %s3, %s257
          %s259 = sshll.u32 %s251, 4
          %s260 = int_to_ptr.vmem [resolvable:$true] %s259
          %265 = dma.hbm_to_vmem [thread:$0]  %s258, 8192, %s260, %s248, 256, 256, 16
        $region32: #{tpu_custom_call.1} parent=15 // pred_fallthru
          _
      $region16: #{tpu_custom_call.1} parent=5 // pred_fallthru
        _
      %p266 = scmp.le.s32.totalorder 1, %s22
      %p267 = scmp.lt.s32.totalorder %s22, 5
      %p268 = pnand %p266, %p267
      %p269 = pneg %p268
      // Predicated region
      $region33: #{tpu_custom_call.1} parent=5 // pred_check
        _
      $region34: #{tpu_custom_call.1} parent=5 // pred_check_branch
        %271 = sbr.rel (%p268) target = $region36
      $region35: #{tpu_custom_call.1} parent=5 // pred_region
        %s272 = ssub.s32 %s22, 1
        %s273 = sand.u32 %s47, 1
        %s274 = scalar_lea.sflag [#allocation4], %s273
        %s275 = sand.u32 %s47, 1
        %s276 = smul.addr %s275, 16
        %s277 = scalar_lea.vmem [#allocation3], %s276
        // Predicated region
        $region37: #{tpu_custom_call.1} parent=35 // pred_check
          %p278 = pneg %p60
        $region38: #{tpu_custom_call.1} parent=35 // pred_check_branch
          %280 = sbr.rel (%p278) target = $region40
        $region39: #{tpu_custom_call.1} parent=35 // pred_region
          %281 = dma.done %s274, 256
        $region40: #{tpu_custom_call.1} parent=35 // pred_fallthru
          _
        %s282 = sand.u32 %s27, 1
        %s283 = scalar_lea.sflag [#allocation7], %s282
        %s284 = sand.u32 %s73, 1
        %s285 = smul.addr %s284, 512
        %s286 = scalar_lea.vmem [#allocation6], %s285
        // Predicated region
        $region41: #{tpu_custom_call.1} parent=35 // pred_check
          %p287 = pneg %p86
        $region42: #{tpu_custom_call.1} parent=35 // pred_check_branch
          %289 = sbr.rel (%p287) target = $region44
        $region43: #{tpu_custom_call.1} parent=35 // pred_region
          %290 = dma.done %s283, 8192
        $region44: #{tpu_custom_call.1} parent=35 // pred_fallthru
          _
        %s291 = sand.u32 %s27, 1
        %s292 = scalar_lea.sflag [#allocation7], %s291
        %s293 = sand.u32 %s99, 1
        %s294 = smul.addr %s293, 512
        %s295 = scalar_lea.vmem [#allocation8], %s294
        // Predicated region
        $region45: #{tpu_custom_call.1} parent=35 // pred_check
          %p296 = pneg %p112
        $region46: #{tpu_custom_call.1} parent=35 // pred_check_branch
          %298 = sbr.rel (%p296) target = $region48
        $region47: #{tpu_custom_call.1} parent=35 // pred_region
          %299 = dma.done %s292, 8192
        $region48: #{tpu_custom_call.1} parent=35 // pred_fallthru
          _
        %s300 = sand.u32 %s125, 1
        %s301 = scalar_lea.sflag [#allocation10], %s300
        %s302 = sand.u32 %s125, 1
        %s303 = smul.addr %s302, 512
        %s304 = scalar_lea.vmem [#allocation9], %s303
        // Predicated region
        $region49: #{tpu_custom_call.1} parent=35 // pred_check
          %p305 = pneg %p138
        $region50: #{tpu_custom_call.1} parent=35 // pred_check_branch
          %307 = sbr.rel (%p305) target = $region52
        $region51: #{tpu_custom_call.1} parent=35 // pred_region
          %308 = dma.done %s301, 8192
        $region52: #{tpu_custom_call.1} parent=35 // pred_fallthru
          _
        %s309 = sand.u32 %s47, 1
        %s310 = scalar_lea.sflag [#allocation4], %s309
        %s311 = sand.u32 %s47, 1
        %s312 = smul.addr %s311, 16
        %s313 = scalar_lea.vmem [#allocation3], %s312
        %p314 = pneg %p60
        %p315 = pneg %p57
        %s316 = sand.u32 %s27, 1
        %s317 = scalar_lea.sflag [#allocation7], %s316
        %s318 = sand.u32 %s73, 1
        %s319 = smul.addr %s318, 512
        %s320 = scalar_lea.vmem [#allocation6], %s319
        %p321 = pneg %p86
        %p322 = pneg %p83
        %s323 = sand.u32 %s27, 1
        %s324 = scalar_lea.sflag [#allocation7], %s323
        %s325 = sand.u32 %s99, 1
        %s326 = smul.addr %s325, 512
        %s327 = scalar_lea.vmem [#allocation8], %s326
        %p328 = pneg %p112
        %p329 = pneg %p109
        %s330 = sand.u32 %s125, 1
        %s331 = scalar_lea.sflag [#allocation10], %s330
        %s332 = sand.u32 %s125, 1
        %s333 = smul.addr %s332, 512
        %s334 = scalar_lea.vmem [#allocation9], %s333
        %p335 = pneg %p138
        %p336 = pneg %p135
        %p337 = pneg %p164
        %p338 = pneg %p161
        %s339 = sand.u32 %s151, 1
        %s340 = scalar_lea.sflag [#allocation5], %s339
        %s341 = sand.u32 %s151, 1
        %s342 = smul.addr %s341, 16
        %s343 = scalar_lea.vmem [#allocation11], %s342
        %s344 = smul.u32 2, %s32
        %s345 = smul.u32 2, %s32
        %s346 = smul.u32 32, %s32
        %p347 = scmp.eq.s32.totalorder %s32, 0
        // Predicated region
        $region53: #{tpu_custom_call.1} parent=35 // pred_check
          %p348 = pneg %p347
        $region54: #{tpu_custom_call.1} parent=35 // pred_check_branch
          %350 = sbr.rel (%p348) target = $region56
        $region55: #{tpu_custom_call.1} parent=35 // pred_region
          %351 = vst [vmem:[#allocation2] sm:$0xff] 0.0
          %352 = vst [vmem:[#allocation2 + $0x8] sm:$0xff] 0.0
        $region56: #{tpu_custom_call.1} parent=35 // pred_fallthru
          _
        %v353 = vld [vmem:[%s277] sm:$0xff]
        %v354 = vld [vmem:[%s277 + $0x8] sm:$0xff]
        %v355 = vld [vmem:[%s286] sm:$0xff]
        %v356 = vld [vmem:[%s286 + $0x8] sm:$0xff]
        %v357 = vld [vmem:[%s286 + $0x10] sm:$0xff]
        %v358 = vld [vmem:[%s286 + $0x18] sm:$0xff]
        %v359 = vld [vmem:[%s286 + $0x20] sm:$0xff]
        %v360 = vld [vmem:[%s286 + $0x28] sm:$0xff]
        %v361 = vld [vmem:[%s286 + $0x30] sm:$0xff]
        %v362 = vld [vmem:[%s286 + $0x38] sm:$0xff]
        %v363 = vld [vmem:[%s286 + $0x40] sm:$0xff]
        %v364 = vld [vmem:[%s286 + $0x48] sm:$0xff]
        %v365 = vld [vmem:[%s286 + $0x50] sm:$0xff]
        %v366 = vld [vmem:[%s286 + $0x58] sm:$0xff]
        %v367 = vld [vmem:[%s286 + $0x60] sm:$0xff]
        %v368 = vld [vmem:[%s286 + $0x68] sm:$0xff]
        %v369 = vld [vmem:[%s286 + $0x70] sm:$0xff]
        %v370 = vld [vmem:[%s286 + $0x78] sm:$0xff]
        %v371 = vld [vmem:[%s286 + $0x80] sm:$0xff]
        %v372 = vld [vmem:[%s286 + $0x88] sm:$0xff]
        %v373 = vld [vmem:[%s286 + $0x90] sm:$0xff]
        %v374 = vld [vmem:[%s286 + $0x98] sm:$0xff]
        %v375 = vld [vmem:[%s286 + $0xa0] sm:$0xff]
        %v376 = vld [vmem:[%s286 + $0xa8] sm:$0xff]
        %v377 = vld [vmem:[%s286 + $0xb0] sm:$0xff]
        %v378 = vld [vmem:[%s286 + $0xb8] sm:$0xff]
        %v379 = vld [vmem:[%s286 + $0xc0] sm:$0xff]
        %v380 = vld [vmem:[%s286 + $0xc8] sm:$0xff]
        %v381 = vld [vmem:[%s286 + $0xd0] sm:$0xff]
        %v382 = vld [vmem:[%s286 + $0xd8] sm:$0xff]
        %v383 = vld [vmem:[%s286 + $0xe0] sm:$0xff]
        %v384 = vld [vmem:[%s286 + $0xe8] sm:$0xff]
        %v385 = vld [vmem:[%s286 + $0xf0] sm:$0xff]
        %v386 = vld [vmem:[%s286 + $0xf8] sm:$0xff]
        %v387 = vld [vmem:[%s286 + $0x100] sm:$0xff]
        %v388 = vld [vmem:[%s286 + $0x108] sm:$0xff]
        %v389 = vld [vmem:[%s286 + $0x110] sm:$0xff]
        %v390 = vld [vmem:[%s286 + $0x118] sm:$0xff]
        %v391 = vld [vmem:[%s286 + $0x120] sm:$0xff]
        %v392 = vld [vmem:[%s286 + $0x128] sm:$0xff]
        %v393 = vld [vmem:[%s286 + $0x130] sm:$0xff]
        %v394 = vld [vmem:[%s286 + $0x138] sm:$0xff]
        %v395 = vld [vmem:[%s286 + $0x140] sm:$0xff]
        %v396 = vld [vmem:[%s286 + $0x148] sm:$0xff]
        %v397 = vld [vmem:[%s286 + $0x150] sm:$0xff]
        %v398 = vld [vmem:[%s286 + $0x158] sm:$0xff]
        %v399 = vld [vmem:[%s286 + $0x160] sm:$0xff]
        %v400 = vld [vmem:[%s286 + $0x168] sm:$0xff]
        %v401 = vld [vmem:[%s286 + $0x170] sm:$0xff]
        %v402 = vld [vmem:[%s286 + $0x178] sm:$0xff]
        %v403 = vld [vmem:[%s286 + $0x180] sm:$0xff]
        %v404 = vld [vmem:[%s286 + $0x188] sm:$0xff]
        %v405 = vld [vmem:[%s286 + $0x190] sm:$0xff]
        %v406 = vld [vmem:[%s286 + $0x198] sm:$0xff]
        %v407 = vld [vmem:[%s286 + $0x1a0] sm:$0xff]
        %v408 = vld [vmem:[%s286 + $0x1a8] sm:$0xff]
        %v409 = vld [vmem:[%s286 + $0x1b0] sm:$0xff]
        %v410 = vld [vmem:[%s286 + $0x1b8] sm:$0xff]
        %v411 = vld [vmem:[%s286 + $0x1c0] sm:$0xff]
        %v412 = vld [vmem:[%s286 + $0x1c8] sm:$0xff]
        %v413 = vld [vmem:[%s286 + $0x1d0] sm:$0xff]
        %v414 = vld [vmem:[%s286 + $0x1d8] sm:$0xff]
        %v415 = vld [vmem:[%s286 + $0x1e0] sm:$0xff]
        %v416 = vld [vmem:[%s286 + $0x1e8] sm:$0xff]
        %v417 = vld [vmem:[%s286 + $0x1f0] sm:$0xff]
        %v418 = vld [vmem:[%s286 + $0x1f8] sm:$0xff]
        %419 = vmatprep.subr.mxu0 %v356
        %420 = vmatpush1.msra.mxu0 %v355
        %421 = vmatprep.subr.mxu0 %v358
        %422 = vmatpush1.msra.mxu0 %v357
        %423 = vmatprep.subr.mxu0 %v360
        %424 = vmatpush1.msra.mxu0 %v359
        %425 = vmatprep.subr.mxu0 %v362
        %426 = vmatpush1.msra.mxu0 %v361
        %427 = vmatprep.subr.mxu0 %v364
        %428 = vmatpush1.msra.mxu0 %v363
        %429 = vmatprep.subr.mxu0 %v366
        %430 = vmatpush1.msra.mxu0 %v365
        %431 = vmatprep.subr.mxu0 %v368
        %432 = vmatpush1.msra.mxu0 %v367
        %433 = vmatprep.subr.mxu0 %v370
        %434 = vmatpush1.msra.mxu0 %v369
        %435 = vmatprep.subr.mxu0 %v372
        %436 = vmatpush1.msra.mxu0 %v371
        %437 = vmatprep.subr.mxu0 %v374
        %438 = vmatpush1.msra.mxu0 %v373
        %439 = vmatprep.subr.mxu0 %v376
        %440 = vmatpush1.msra.mxu0 %v375
        %441 = vmatprep.subr.mxu0 %v378
        %442 = vmatpush1.msra.mxu0 %v377
        %443 = vmatprep.subr.mxu0 %v380
        %444 = vmatpush1.msra.mxu0 %v379
        %445 = vmatprep.subr.mxu0 %v382
        %446 = vmatpush1.msra.mxu0 %v381
        %447 = vmatprep.subr.mxu0 %v384
        %448 = vmatpush1.msra.mxu0 %v383
        %449 = vmatprep.subr.mxu0 %v386
        %450 = vmatpush1.msra.mxu0 %v385
        %451 = vmatprep.subr.mxu0 %v388
        %452 = vmatpush1.msra.mxu0 %v387
        %453 = vmatprep.subr.mxu0 %v390
        %454 = vmatpush1.msra.mxu0 %v389
        %455 = vmatprep.subr.mxu0 %v392
        %456 = vmatpush1.msra.mxu0 %v391
        %457 = vmatprep.subr.mxu0 %v394
        %458 = vmatpush1.msra.mxu0 %v393
        %459 = vmatprep.subr.mxu0 %v396
        %460 = vmatpush1.msra.mxu0 %v395
        %461 = vmatprep.subr.mxu0 %v398
        %462 = vmatpush1.msra.mxu0 %v397
        %463 = vmatprep.subr.mxu0 %v400
        %464 = vmatpush1.msra.mxu0 %v399
        %465 = vmatprep.subr.mxu0 %v402
        %466 = vmatpush1.msra.mxu0 %v401
        %467 = vmatprep.subr.mxu0 %v404
        %468 = vmatpush1.msra.mxu0 %v403
        %469 = vmatprep.subr.mxu0 %v406
        %470 = vmatpush1.msra.mxu0 %v405
        %471 = vmatprep.subr.mxu0 %v408
        %472 = vmatpush1.msra.mxu0 %v407
        %473 = vmatprep.subr.mxu0 %v410
        %474 = vmatpush1.msra.mxu0 %v409
        %475 = vmatprep.subr.mxu0 %v412
        %476 = vmatpush1.msra.mxu0 %v411
        %477 = vmatprep.subr.mxu0 %v414
        %478 = vmatpush1.msra.mxu0 %v413
        %479 = vmatprep.subr.mxu0 %v416
        %480 = vmatpush1.msra.mxu0 %v415
        %481 = vmatprep.subr.mxu0 %v418
        %482 = vmatpush1.msra.mxu0 %v417
        %483 = vmatprep.mubr.f32.mxu0 %v354
        %484 = vmatmul.mubr.f32.gmra.mrb[0].mxu0 %v353
        %v485 = vpop.f32.mrb[0].mxu0
        %v486 = vadd.f32 0.0, %v485
        %v487 = vpop.f32.mrb[0].mxu0
        %v488 = vadd.f32 0.0, %v487
        %489 = vdwg.mxu0
        %v490 = vld [vmem:[%s295] sm:$0xff]
        %v491 = vld [vmem:[%s295 + $0x8] sm:$0xff]
        %v492 = vld [vmem:[%s295 + $0x10] sm:$0xff]
        %v493 = vld [vmem:[%s295 + $0x18] sm:$0xff]
        %v494 = vld [vmem:[%s295 + $0x20] sm:$0xff]
        %v495 = vld [vmem:[%s295 + $0x28] sm:$0xff]
        %v496 = vld [vmem:[%s295 + $0x30] sm:$0xff]
        %v497 = vld [vmem:[%s295 + $0x38] sm:$0xff]
        %v498 = vld [vmem:[%s295 + $0x40] sm:$0xff]
        %v499 = vld [vmem:[%s295 + $0x48] sm:$0xff]
        %v500 = vld [vmem:[%s295 + $0x50] sm:$0xff]
        %v501 = vld [vmem:[%s295 + $0x58] sm:$0xff]
        %v502 = vld [vmem:[%s295 + $0x60] sm:$0xff]
        %v503 = vld [vmem:[%s295 + $0x68] sm:$0xff]
        %v504 = vld [vmem:[%s295 + $0x70] sm:$0xff]
        %v505 = vld [vmem:[%s295 + $0x78] sm:$0xff]
        %v506 = vld [vmem:[%s295 + $0x80] sm:$0xff]
        %v507 = vld [vmem:[%s295 + $0x88] sm:$0xff]
        %v508 = vld [vmem:[%s295 + $0x90] sm:$0xff]
        %v509 = vld [vmem:[%s295 + $0x98] sm:$0xff]
        %v510 = vld [vmem:[%s295 + $0xa0] sm:$0xff]
        %v511 = vld [vmem:[%s295 + $0xa8] sm:$0xff]
        %v512 = vld [vmem:[%s295 + $0xb0] sm:$0xff]
        %v513 = vld [vmem:[%s295 + $0xb8] sm:$0xff]
        %v514 = vld [vmem:[%s295 + $0xc0] sm:$0xff]
        %v515 = vld [vmem:[%s295 + $0xc8] sm:$0xff]
        %v516 = vld [vmem:[%s295 + $0xd0] sm:$0xff]
        %v517 = vld [vmem:[%s295 + $0xd8] sm:$0xff]
        %v518 = vld [vmem:[%s295 + $0xe0] sm:$0xff]
        %v519 = vld [vmem:[%s295 + $0xe8] sm:$0xff]
        %v520 = vld [vmem:[%s295 + $0xf0] sm:$0xff]
        %v521 = vld [vmem:[%s295 + $0xf8] sm:$0xff]
        %v522 = vld [vmem:[%s295 + $0x100] sm:$0xff]
        %v523 = vld [vmem:[%s295 + $0x108] sm:$0xff]
        %v524 = vld [vmem:[%s295 + $0x110] sm:$0xff]
        %v525 = vld [vmem:[%s295 + $0x118] sm:$0xff]
        %v526 = vld [vmem:[%s295 + $0x120] sm:$0xff]
        %v527 = vld [vmem:[%s295 + $0x128] sm:$0xff]
        %v528 = vld [vmem:[%s295 + $0x130] sm:$0xff]
        %v529 = vld [vmem:[%s295 + $0x138] sm:$0xff]
        %v530 = vld [vmem:[%s295 + $0x140] sm:$0xff]
        %v531 = vld [vmem:[%s295 + $0x148] sm:$0xff]
        %v532 = vld [vmem:[%s295 + $0x150] sm:$0xff]
        %v533 = vld [vmem:[%s295 + $0x158] sm:$0xff]
        %v534 = vld [vmem:[%s295 + $0x160] sm:$0xff]
        %v535 = vld [vmem:[%s295 + $0x168] sm:$0xff]
        %v536 = vld [vmem:[%s295 + $0x170] sm:$0xff]
        %v537 = vld [vmem:[%s295 + $0x178] sm:$0xff]
        %v538 = vld [vmem:[%s295 + $0x180] sm:$0xff]
        %v539 = vld [vmem:[%s295 + $0x188] sm:$0xff]
        %v540 = vld [vmem:[%s295 + $0x190] sm:$0xff]
        %v541 = vld [vmem:[%s295 + $0x198] sm:$0xff]
        %v542 = vld [vmem:[%s295 + $0x1a0] sm:$0xff]
        %v543 = vld [vmem:[%s295 + $0x1a8] sm:$0xff]
        %v544 = vld [vmem:[%s295 + $0x1b0] sm:$0xff]
        %v545 = vld [vmem:[%s295 + $0x1b8] sm:$0xff]
        %v546 = vld [vmem:[%s295 + $0x1c0] sm:$0xff]
        %v547 = vld [vmem:[%s295 + $0x1c8] sm:$0xff]
        %v548 = vld [vmem:[%s295 + $0x1d0] sm:$0xff]
        %v549 = vld [vmem:[%s295 + $0x1d8] sm:$0xff]
        %v550 = vld [vmem:[%s295 + $0x1e0] sm:$0xff]
        %v551 = vld [vmem:[%s295 + $0x1e8] sm:$0xff]
        %v552 = vld [vmem:[%s295 + $0x1f0] sm:$0xff]
        %v553 = vld [vmem:[%s295 + $0x1f8] sm:$0xff]
        %554 = vmatprep.subr.mxu0 %v491
        %555 = vmatpush1.msra.mxu0 %v490
        %556 = vmatprep.subr.mxu0 %v493
        %557 = vmatpush1.msra.mxu0 %v492
        %558 = vmatprep.subr.mxu0 %v495
        %559 = vmatpush1.msra.mxu0 %v494
        %560 = vmatprep.subr.mxu0 %v497
        %561 = vmatpush1.msra.mxu0 %v496
        %562 = vmatprep.subr.mxu0 %v499
        %563 = vmatpush1.msra.mxu0 %v498
        %564 = vmatprep.subr.mxu0 %v501
        %565 = vmatpush1.msra.mxu0 %v500
        %566 = vmatprep.subr.mxu0 %v503
        %567 = vmatpush1.msra.mxu0 %v502
        %568 = vmatprep.subr.mxu0 %v505
        %569 = vmatpush1.msra.mxu0 %v504
        %570 = vmatprep.subr.mxu0 %v507
        %571 = vmatpush1.msra.mxu0 %v506
        %572 = vmatprep.subr.mxu0 %v509
        %573 = vmatpush1.msra.mxu0 %v508
        %574 = vmatprep.subr.mxu0 %v511
        %575 = vmatpush1.msra.mxu0 %v510
        %576 = vmatprep.subr.mxu0 %v513
        %577 = vmatpush1.msra.mxu0 %v512
        %578 = vmatprep.subr.mxu0 %v515
        %579 = vmatpush1.msra.mxu0 %v514
        %580 = vmatprep.subr.mxu0 %v517
        %581 = vmatpush1.msra.mxu0 %v516
        %582 = vmatprep.subr.mxu0 %v519
        %583 = vmatpush1.msra.mxu0 %v518
        %584 = vmatprep.subr.mxu0 %v521
        %585 = vmatpush1.msra.mxu0 %v520
        %586 = vmatprep.subr.mxu0 %v523
        %587 = vmatpush1.msra.mxu0 %v522
        %588 = vmatprep.subr.mxu0 %v525
        %589 = vmatpush1.msra.mxu0 %v524
        %590 = vmatprep.subr.mxu0 %v527
        %591 = vmatpush1.msra.mxu0 %v526
        %592 = vmatprep.subr.mxu0 %v529
        %593 = vmatpush1.msra.mxu0 %v528
        %594 = vmatprep.subr.mxu0 %v531
        %595 = vmatpush1.msra.mxu0 %v530
        %596 = vmatprep.subr.mxu0 %v533
        %597 = vmatpush1.msra.mxu0 %v532
        %598 = vmatprep.subr.mxu0 %v535
        %599 = vmatpush1.msra.mxu0 %v534
        %600 = vmatprep.subr.mxu0 %v537
        %601 = vmatpush1.msra.mxu0 %v536
        %602 = vmatprep.subr.mxu0 %v539
        %603 = vmatpush1.msra.mxu0 %v538
        %604 = vmatprep.subr.mxu0 %v541
        %605 = vmatpush1.msra.mxu0 %v540
        %606 = vmatprep.subr.mxu0 %v543
        %607 = vmatpush1.msra.mxu0 %v542
        %608 = vmatprep.subr.mxu0 %v545
        %609 = vmatpush1.msra.mxu0 %v544
        %610 = vmatprep.subr.mxu0 %v547
        %611 = vmatpush1.msra.mxu0 %v546
        %612 = vmatprep.subr.mxu0 %v549
        %613 = vmatpush1.msra.mxu0 %v548
        %614 = vmatprep.subr.mxu0 %v551
        %615 = vmatpush1.msra.mxu0 %v550
        %616 = vmatprep.subr.mxu0 %v553
        %617 = vmatpush1.msra.mxu0 %v552
        %618 = vmatprep.mubr.f32.mxu0 %v354
        %619 = vmatmul.mubr.f32.gmra.mrb[0].mxu0 %v353
        %v620 = vpop.f32.mrb[0].mxu0
        %v621 = vadd.f32 0.0, %v620
        %v622 = vpop.f32.mrb[0].mxu0
        %v623 = vadd.f32 0.0, %v622
        %624 = vdwg.mxu0
        %v625 = vxor.u32 %v486, 2147483648
        %v626 = vxor.u32 %v488, 2147483648
        %v627 = vmul.f32 %v625, 1.442695
        %v628 = vpow.pop %v627
        %v629 = vmul.f32 %v626, 1.442695
        %v630 = vpow.pop %v629
        %v631 = vadd.f32 %v628, 1.0
        %v632 = vadd.f32 %v630, 1.0
        %v633 = vrcp.pop %v631
        %v634 = vmul.f32 1.0, %v633
        %v635 = vrcp.pop %v632
        %v636 = vmul.f32 1.0, %v635
        %v637 = vmul.f32 %v486, %v634
        %v638 = vmul.f32 %v488, %v636
        %v639 = vmul.f32 %v637, %v621
        %v640 = vmul.f32 %v638, %v623
        %v641 = vld [vmem:[#allocation2] sm:$0xff]
        %v642 = vld [vmem:[#allocation2 + $0x8] sm:$0xff]
        %v643 = vld [vmem:[%s304] sm:$0xff]
        %v644 = vld [vmem:[%s304 + $0x8] sm:$0xff]
        %v645 = vld [vmem:[%s304 + $0x10] sm:$0xff]
        %v646 = vld [vmem:[%s304 + $0x18] sm:$0xff]
        %v647 = vld [vmem:[%s304 + $0x20] sm:$0xff]
        %v648 = vld [vmem:[%s304 + $0x28] sm:$0xff]
        %v649 = vld [vmem:[%s304 + $0x30] sm:$0xff]
        %v650 = vld [vmem:[%s304 + $0x38] sm:$0xff]
        %v651 = vld [vmem:[%s304 + $0x40] sm:$0xff]
        %v652 = vld [vmem:[%s304 + $0x48] sm:$0xff]
        %v653 = vld [vmem:[%s304 + $0x50] sm:$0xff]
        %v654 = vld [vmem:[%s304 + $0x58] sm:$0xff]
        %v655 = vld [vmem:[%s304 + $0x60] sm:$0xff]
        %v656 = vld [vmem:[%s304 + $0x68] sm:$0xff]
        %v657 = vld [vmem:[%s304 + $0x70] sm:$0xff]
        %v658 = vld [vmem:[%s304 + $0x78] sm:$0xff]
        %v659 = vld [vmem:[%s304 + $0x80] sm:$0xff]
        %v660 = vld [vmem:[%s304 + $0x88] sm:$0xff]
        %v661 = vld [vmem:[%s304 + $0x90] sm:$0xff]
        %v662 = vld [vmem:[%s304 + $0x98] sm:$0xff]
        %v663 = vld [vmem:[%s304 + $0xa0] sm:$0xff]
        %v664 = vld [vmem:[%s304 + $0xa8] sm:$0xff]
        %v665 = vld [vmem:[%s304 + $0xb0] sm:$0xff]
        %v666 = vld [vmem:[%s304 + $0xb8] sm:$0xff]
        %v667 = vld [vmem:[%s304 + $0xc0] sm:$0xff]
        %v668 = vld [vmem:[%s304 + $0xc8] sm:$0xff]
        %v669 = vld [vmem:[%s304 + $0xd0] sm:$0xff]
        %v670 = vld [vmem:[%s304 + $0xd8] sm:$0xff]
        %v671 = vld [vmem:[%s304 + $0xe0] sm:$0xff]
        %v672 = vld [vmem:[%s304 + $0xe8] sm:$0xff]
        %v673 = vld [vmem:[%s304 + $0xf0] sm:$0xff]
        %v674 = vld [vmem:[%s304 + $0xf8] sm:$0xff]
        %v675 = vld [vmem:[%s304 + $0x100] sm:$0xff]
        %v676 = vld [vmem:[%s304 + $0x108] sm:$0xff]
        %v677 = vld [vmem:[%s304 + $0x110] sm:$0xff]
        %v678 = vld [vmem:[%s304 + $0x118] sm:$0xff]
        %v679 = vld [vmem:[%s304 + $0x120] sm:$0xff]
        %v680 = vld [vmem:[%s304 + $0x128] sm:$0xff]
        %v681 = vld [vmem:[%s304 + $0x130] sm:$0xff]
        %v682 = vld [vmem:[%s304 + $0x138] sm:$0xff]
        %v683 = vld [vmem:[%s304 + $0x140] sm:$0xff]
        %v684 = vld [vmem:[%s304 + $0x148] sm:$0xff]
        %v685 = vld [vmem:[%s304 + $0x150] sm:$0xff]
        %v686 = vld [vmem:[%s304 + $0x158] sm:$0xff]
        %v687 = vld [vmem:[%s304 + $0x160] sm:$0xff]
        %v688 = vld [vmem:[%s304 + $0x168] sm:$0xff]
        %v689 = vld [vmem:[%s304 + $0x170] sm:$0xff]
        %v690 = vld [vmem:[%s304 + $0x178] sm:$0xff]
        %v691 = vld [vmem:[%s304 + $0x180] sm:$0xff]
        %v692 = vld [vmem:[%s304 + $0x188] sm:$0xff]
        %v693 = vld [vmem:[%s304 + $0x190] sm:$0xff]
        %v694 = vld [vmem:[%s304 + $0x198] sm:$0xff]
        %v695 = vld [vmem:[%s304 + $0x1a0] sm:$0xff]
        %v696 = vld [vmem:[%s304 + $0x1a8] sm:$0xff]
        %v697 = vld [vmem:[%s304 + $0x1b0] sm:$0xff]
        %v698 = vld [vmem:[%s304 + $0x1b8] sm:$0xff]
        %v699 = vld [vmem:[%s304 + $0x1c0] sm:$0xff]
        %v700 = vld [vmem:[%s304 + $0x1c8] sm:$0xff]
        %v701 = vld [vmem:[%s304 + $0x1d0] sm:$0xff]
        %v702 = vld [vmem:[%s304 + $0x1d8] sm:$0xff]
        %v703 = vld [vmem:[%s304 + $0x1e0] sm:$0xff]
        %v704 = vld [vmem:[%s304 + $0x1e8] sm:$0xff]
        %v705 = vld [vmem:[%s304 + $0x1f0] sm:$0xff]
        %v706 = vld [vmem:[%s304 + $0x1f8] sm:$0xff]
        %707 = vmatprep.subr.mxu0 %v644
        %708 = vmatpush1.msra.mxu0 %v643
        %709 = vmatprep.subr.mxu0 %v646
        %710 = vmatpush1.msra.mxu0 %v645
        %711 = vmatprep.subr.mxu0 %v648
        %712 = vmatpush1.msra.mxu0 %v647
        %713 = vmatprep.subr.mxu0 %v650
        %714 = vmatpush1.msra.mxu0 %v649
        %715 = vmatprep.subr.mxu0 %v652
        %716 = vmatpush1.msra.mxu0 %v651
        %717 = vmatprep.subr.mxu0 %v654
        %718 = vmatpush1.msra.mxu0 %v653
        %719 = vmatprep.subr.mxu0 %v656
        %720 = vmatpush1.msra.mxu0 %v655
        %721 = vmatprep.subr.mxu0 %v658
        %722 = vmatpush1.msra.mxu0 %v657
        %723 = vmatprep.subr.mxu0 %v660
        %724 = vmatpush1.msra.mxu0 %v659
        %725 = vmatprep.subr.mxu0 %v662
        %726 = vmatpush1.msra.mxu0 %v661
        %727 = vmatprep.subr.mxu0 %v664
        %728 = vmatpush1.msra.mxu0 %v663
        %729 = vmatprep.subr.mxu0 %v666
        %730 = vmatpush1.msra.mxu0 %v665
        %731 = vmatprep.subr.mxu0 %v668
        %732 = vmatpush1.msra.mxu0 %v667
        %733 = vmatprep.subr.mxu0 %v670
        %734 = vmatpush1.msra.mxu0 %v669
        %735 = vmatprep.subr.mxu0 %v672
        %736 = vmatpush1.msra.mxu0 %v671
        %737 = vmatprep.subr.mxu0 %v674
        %738 = vmatpush1.msra.mxu0 %v673
        %739 = vmatprep.subr.mxu0 %v676
        %740 = vmatpush1.msra.mxu0 %v675
        %741 = vmatprep.subr.mxu0 %v678
        %742 = vmatpush1.msra.mxu0 %v677
        %743 = vmatprep.subr.mxu0 %v680
        %744 = vmatpush1.msra.mxu0 %v679
        %745 = vmatprep.subr.mxu0 %v682
        %746 = vmatpush1.msra.mxu0 %v681
        %747 = vmatprep.subr.mxu0 %v684
        %748 = vmatpush1.msra.mxu0 %v683
        %749 = vmatprep.subr.mxu0 %v686
        %750 = vmatpush1.msra.mxu0 %v685
        %751 = vmatprep.subr.mxu0 %v688
        %752 = vmatpush1.msra.mxu0 %v687
        %753 = vmatprep.subr.mxu0 %v690
        %754 = vmatpush1.msra.mxu0 %v689
        %755 = vmatprep.subr.mxu0 %v692
        %756 = vmatpush1.msra.mxu0 %v691
        %757 = vmatprep.subr.mxu0 %v694
        %758 = vmatpush1.msra.mxu0 %v693
        %759 = vmatprep.subr.mxu0 %v696
        %760 = vmatpush1.msra.mxu0 %v695
        %761 = vmatprep.subr.mxu0 %v698
        %762 = vmatpush1.msra.mxu0 %v697
        %763 = vmatprep.subr.mxu0 %v700
        %764 = vmatpush1.msra.mxu0 %v699
        %765 = vmatprep.subr.mxu0 %v702
        %766 = vmatpush1.msra.mxu0 %v701
        %767 = vmatprep.subr.mxu0 %v704
        %768 = vmatpush1.msra.mxu0 %v703
        %769 = vmatprep.subr.mxu0 %v706
        %770 = vmatpush1.msra.mxu0 %v705
        %771 = vmatprep.mubr.f32.mxu0 %v640
        %772 = vmatmul.mubr.f32.gmra.mrb[0].mxu0 %v639
        %v773 = vpop.f32.mrb[0].mxu0
        %v774 = vadd.f32 0.0, %v773
        %v775 = vpop.f32.mrb[0].mxu0
        %v776 = vadd.f32 0.0, %v775
        %777 = vdwg.mxu0
        %v778 = vadd.f32 %v641, %v774
        %v779 = vadd.f32 %v642, %v776
        %780 = vst [vmem:[#allocation2] sm:$0xff] %v778
        %781 = vst [vmem:[#allocation2 + $0x8] sm:$0xff] %v779
        %p782 = scmp.eq.s32.totalorder %s32, 1
        // Predicated region
        $region57: #{tpu_custom_call.1} parent=35 // pred_check
          %p783 = pneg %p782
        $region58: #{tpu_custom_call.1} parent=35 // pred_check_branch
          %785 = sbr.rel (%p783) target = $region60
        $region59: #{tpu_custom_call.1} parent=35 // pred_region
          %v786 = vld [vmem:[#allocation2] sm:$0xff]
          %v787 = vld [vmem:[#allocation2 + $0x8] sm:$0xff]
          %788 = vst [vmem:[%s343] sm:$0xff] %v786
          %789 = vst [vmem:[%s343 + $0x8] sm:$0xff] %v787
        $region60: #{tpu_custom_call.1} parent=35 // pred_fallthru
          _
        %s790 = sand.u32 %s151, 1
        %s791 = scalar_lea.sflag [#allocation5], %s790
        %s792 = sand.u32 %s151, 1
        %s793 = smul.addr %s792, 16
        %s794 = scalar_lea.vmem [#allocation11], %s793
        // Predicated region
        $region61: #{tpu_custom_call.1} parent=35 // pred_check
          %p795 = pneg %p161
        $region62: #{tpu_custom_call.1} parent=35 // pred_check_branch
          %797 = sbr.rel (%p795) target = $region64
        $region63: #{tpu_custom_call.1} parent=35 // pred_region
          %s799 = ssub.s32 256, 256
          %800 = vsyncadd %s791, %s799
          %s801 = smul.addr %s31, 2
          %s802 = smul.addr %s801, 128
          %s803 = scalar_lea.hbm %s4, %s802
          %s805 = sshll.u32 %s794, 4
          %s806 = int_to_ptr.vmem [resolvable:$true] %s805
          %808 = dma.vmem_to_hbm [thread:$0]  %s806, 256, %s803, %s791
        $region64: #{tpu_custom_call.1} parent=35 // pred_fallthru
          _
      $region36: #{tpu_custom_call.1} parent=5 // pred_fallthru
        _
      %p809 = scmp.le.s32.totalorder 2, %s22
      // Predicated region
      $region65: #{tpu_custom_call.1} parent=5 // pred_check
        %p810 = pneg %p809
      $region66: #{tpu_custom_call.1} parent=5 // pred_check_branch
        %812 = sbr.rel (%p810) target = $region68
      $region67: #{tpu_custom_call.1} parent=5 // pred_region
        %s813 = ssub.s32 %s22, 2
        // Predicated region
        $region69: #{tpu_custom_call.1} parent=67 // pred_check
          %p814 = pneg %p167
        $region70: #{tpu_custom_call.1} parent=67 // pred_check_branch
          %816 = sbr.rel (%p814) target = $region72
        $region71: #{tpu_custom_call.1} parent=67 // pred_region
          %s817 = sand.u32 %s152, 1
          %s818 = scalar_lea.sflag [#allocation5], %s817
          %s819 = sand.u32 %s152, 1
          %s820 = smul.addr %s819, 16
          %s821 = scalar_lea.vmem [#allocation11], %s820
          %822 = dma.done %s818, 256
        $region72: #{tpu_custom_call.1} parent=67 // pred_fallthru
          _
      $region68: #{tpu_custom_call.1} parent=5 // pred_fallthru
        _
    $region6: #{tpu_custom_call.1} parent=1 // loop_footer
      %s26 = sadd.s32 1, %s22
    $region7: #{tpu_custom_call.1} parent=1 // loop_footer_branch
      %21 = sbr.rel target = $region3
    $region8: #{tpu_custom_call.1} parent=1 // loop_exit
      _
    %823 = vsyncpa [#allocation4], 1
    %s824 = scalar_lea.sflag [#allocation4], 1
    %825 = vsyncpa %s824, 1
    %826 = vsyncpa [#allocation7], 1
    %s827 = scalar_lea.sflag [#allocation7], 1
    %828 = vsyncpa %s827, 1
    %829 = vsyncpa [#allocation10], 1
    %s830 = scalar_lea.sflag [#allocation10], 1
    %831 = vsyncpa %s830, 1
    %832 = vsyncpa [#allocation5], 1
    %s833 = scalar_lea.sflag [#allocation5], 1
    %834 = vsyncpa %s833, 1

</llo_original>
